<compile_context>
chip_gen: v6e
topology: v6e:2x2x1
jax: 0.10.0
libtpu: 0.0.40
codegen_flags: <defaults>
</compile_context>

<pallas_src>
import jax
import jax.numpy as jnp
import numpy as np
from jax.experimental import pallas as pl
from jax.experimental.pallas import tpu as pltpu


def _round_up(x, m):
    return ((x + m - 1) // m) * m


def _make_control_grid(grid_size):
    # Same construction as the torch module: meshgrid('xy') of linspace(-1,1).
    axis_coords = np.linspace(-1.0, 1.0, grid_size)
    X, Y = np.meshgrid(axis_coords, axis_coords)
    return np.stack([X.reshape(-1), Y.reshape(-1)], axis=0)  # (2, N) float64


def make_transformed_grid_loss(grid_size=20, max_tile=32768):
    """Returns (loss_fn(theta, theta_GT) -> scalar, P) for the affine model."""
    # Force the lane-tile cap to a multiple of 128 (128-lane BlockSpec rule).
    max_tile = max(128, _round_up(int(max_tile), 128))

    P_np = _make_control_grid(grid_size)
    X, Y = P_np[0], P_np[1]
    n_pts = float(grid_size * grid_size)
    # 3x3 Gram of [X; Y; 1] (host precompute, baked in as compile-time constants).
    sxx = float(np.dot(X, X))
    syy = float(np.dot(Y, Y))
    sxy2 = 2.0 * float(np.dot(X, Y))
    sx2 = 2.0 * float(np.sum(X))
    sy2 = 2.0 * float(np.sum(Y))
    # For the symmetric default grid these are exactly 0 -> drop at trace time.
    include_cross = (abs(sxy2) > 1e-6) or (abs(sx2) > 1e-6) or (abs(sy2) > 1e-6)

    def kernel(d_ref, o_ref):
        # Resident (1,1) accumulator: init on the first grid step.
        @pl.when(pl.program_id(0) == 0)
        def _():
            o_ref[...] = jnp.zeros_like(o_ref)

        d = d_ref[...]                    # (6, TB), batch along lanes, D = theta - theta_GT
        dsq = d * d
        # Per-sublane Gram weights [sxx, syy, N, sxx, syy, N] via an iota select:
        # keeps every VPU op dense over the full (6, TB) tile (no 1-sublane slices).
        row = jax.lax.broadcasted_iota(jnp.int32, d.shape, 0) % 3
        w = jnp.where(row == 0, sxx, jnp.where(row == 1, syy, n_pts))
        tile_sum = jnp.sum(w * dsq)       # cross-lane + sublane reduce (XLU)

        if include_cross:                 # never taken for the symmetric default grid
            cross = (sxy2 * (d[0:1, :] * d[1:2, :] + d[3:4, :] * d[4:5, :])
                     + sx2 * (d[0:1, :] * d[2:3, :] + d[3:4, :] * d[5:6, :])
                     + sy2 * (d[1:2, :] * d[2:3, :] + d[4:5, :] * d[5:6, :]))
            tile_sum = tile_sum + jnp.sum(cross)

        o_ref[...] += tile_sum

    @jax.jit
    def loss_fn(theta, theta_gt):
        B = theta.shape[0]
        # Single difference operand (linearity) -> half the DMA / relayout work.
        d = (theta.astype(jnp.float32).reshape(B, 6)
             - theta_gt.astype(jnp.float32).reshape(B, 6)).T          # (6, B)
        tb = min(max_tile, _round_up(B, 128))                          # multiple of 128
        b_pad = _round_up(B, tb)
        d = jnp.pad(d, ((0, 0), (0, b_pad - B)))    # zero cols -> exactly zero loss

        total = pl.pallas_call(
            kernel,
            out_shape=jax.ShapeDtypeStruct((1, 1), jnp.float32),
            grid=(b_pad // tb,),
            in_specs=[pl.BlockSpec((6, tb), lambda i: (0, i))],
            out_specs=pl.BlockSpec((1, 1), lambda i: (0, 0)),
            compiler_params=pltpu.CompilerParams(
                dimension_semantics=("arbitrary",)),   # output accumulates across steps
        )(d)

        # Mean over the true B * N (padding contributed exactly zero).
        return total[0, 0] / jnp.float32(B * n_pts)

    P = jnp.asarray(P_np, dtype=jnp.float32)
    return loss_fn, P


def _reference_loss(theta, theta_gt, P):
    """Direct (un-reduced) formulation matching the torch module."""
    B = theta.shape[0]
    t = theta.reshape(B, 6).astype(jnp.float32)
    g = theta_gt.reshape(B, 6).astype(jnp.float32)
    X = P[0][None, :]
    Y = P[1][None, :]

    def warp(p):
        xp = p[:, 0:1] * X + p[:, 1:2] * Y + p[:, 2:3]
        yp = p[:, 3:4] * X + p[:, 4:5] * Y + p[:, 5:6]
        return xp, yp

    xpt, ypt = warp(t)
    xpg, ypg = warp(g)
    return jnp.mean((xpt - xpg) ** 2 + (ypt - ypg) ** 2)


if __name__ == "__main__":
    key = jax.random.PRNGKey(0)
    k1, k2, k3, k4 = jax.random.split(key, 4)

    identity = jnp.asarray([1.0, 0.0, 0.0, 0.0, 1.0, 0.0], dtype=jnp.float32)

    # --- small test (B = 2, as in the torch test harness); single grid step ---
    loss_fn, P = make_transformed_grid_loss(grid_size=20)
    B = 2
    theta = identity[None, :] + 0.1 * jax.random.normal(k1, (B, 6), dtype=jnp.float32)
    theta_gt = identity[None, :] + 0.1 * jax.random.normal(k2, (B, 6), dtype=jnp.float32)
    loss = jax.block_until_ready(loss_fn(theta, theta_gt))
    ref = _reference_loss(theta, theta_gt, P)
    assert np.allclose(np.asarray(loss), np.asarray(ref), rtol=1e-4, atol=1e-6), (loss, ref)

    # --- multi-tile accumulation + padding path (B=300, TB=128 -> 3 grid steps) ---
    loss_fn_tiled, _ = make_transformed_grid_loss(grid_size=20, max_tile=128)
    B2 = 300
    theta2 = identity[None, :] + 0.1 * jax.random.normal(k3, (B2, 6), dtype=jnp.float32)
    theta2_gt = identity[None, :] + 0.1 * jax.random.normal(k4, (B2, 6), dtype=jnp.float32)
    loss2 = jax.block_until_ready(loss_fn_tiled(theta2, theta2_gt))
    ref2 = _reference_loss(theta2, theta2_gt, P)
    assert np.allclose(np.asarray(loss2), np.asarray(ref2), rtol=1e-4, atol=1e-6), (loss2, ref2)

    print("KERNEL_OK")
</pallas_src>

<mosaic_0001>
module attributes {stable_mosaic.version = 11 : i64} {
  func.func @kernel(%arg0: i32, %arg1: memref<6x128xf32, #tpu.memory_space<vmem>>, %arg2: memref<1x1xf32, #tpu.memory_space<vmem>>) attributes {dimension_semantics = [#tpu.dimension_semantics<arbitrary>], iteration_bounds = array<i64: 1>, scalar_prefetch = 0 : i64, scratch_operands = 0 : i64, tpu.core_type = #tpu.core_type<tc>, window_params = [{transform_indices = @transform_0, window_bounds = array<i64: 6, 128>}, {pipeline_mode = #tpu.pipeline_mode<synchronous>, transform_indices = @transform_1, window_bounds = array<i64: 1, 1>}]} {
    %c0_i32 = arith.constant 0 : i32
    %0 = arith.cmpi eq, %arg0, %c0_i32 : i32
    %1 = arith.extui %0 : i1 to i32
    %c0_i32_0 = arith.constant 0 : i32
    %2 = arith.cmpi ne, %1, %c0_i32_0 : i32
    scf.if %2 {
      %cst_15 = arith.constant 0.000000e+00 : f32
      %40 = vector.broadcast %cst_15 : f32 to vector<1x1xf32>
      %c0_16 = arith.constant 0 : index
      %c0_17 = arith.constant 0 : index
      %41 = vector.load %arg2[%c0_16, %c0_17] : memref<1x1xf32, #tpu.memory_space<vmem>>, vector<1x1xf32>
      tpu.vector_store %arg2[%c0_16, %c0_17], %40 {strides = array<i32>} : memref<1x1xf32, #tpu.memory_space<vmem>>, vector<1x1xf32>,
    } else {
    }
    %c0 = arith.constant 0 : index
    %c0_1 = arith.constant 0 : index
    %3 = vector.load %arg1[%c0, %c0_1] : memref<6x128xf32, #tpu.memory_space<vmem>>, vector<6x128xf32>
    %4 = arith.mulf %3, %3 : vector<6x128xf32>
    %5 = tpu.iota {dimensions = array<i32: 0>} : vector<6x128xi32>
    %c3_i32 = arith.constant 3 : i32
    %c0_i32_2 = arith.constant 0 : i32
    %6 = arith.cmpi eq, %c3_i32, %c0_i32_2 : i32
    %c1_i32 = arith.constant 1 : i32
    %7 = arith.select %6, %c1_i32, %c3_i32 : i32
    %8 = vector.broadcast %7 : i32 to vector<6x128xi32>
    %9 = arith.remsi %5, %8 : vector<6x128xi32>
    %c0_i32_3 = arith.constant 0 : i32
    %10 = vector.broadcast %c0_i32_3 : i32 to vector<6x128xi32>
    %11 = arith.cmpi ne, %9, %10 : vector<6x128xi32>
    %c0_i32_4 = arith.constant 0 : i32
    %12 = vector.broadcast %c0_i32_4 : i32 to vector<6x128xi32>
    %13 = arith.cmpi slt, %9, %12 : vector<6x128xi32>
    %c0_i32_5 = arith.constant 0 : i32
    %14 = arith.cmpi slt, %7, %c0_i32_5 : i32
    %15 = vector.broadcast %14 : i1 to vector<6x128xi1>
    %16 = vector.broadcast %15 : vector<6x128xi1> to vector<6x128xi1>
    %17 = arith.xori %13, %16 : vector<6x128xi1>
    %18 = arith.andi %17, %11 : vector<6x128xi1>
    %19 = vector.broadcast %7 : i32 to vector<6x128xi32>
    %20 = arith.addi %9, %19 : vector<6x128xi32>
    %21 = arith.select %18, %20, %9 : vector<6x128xi1>, vector<6x128xi32>
    %c0_i32_6 = arith.constant 0 : i32
    %22 = vector.broadcast %c0_i32_6 : i32 to vector<6x128xi32>
    %23 = arith.cmpi eq, %21, %22 : vector<6x128xi32>
    %c1_i32_7 = arith.constant 1 : i32
    %24 = vector.broadcast %c1_i32_7 : i32 to vector<6x128xi32>
    %25 = arith.cmpi eq, %21, %24 : vector<6x128xi32>
    %cst = arith.constant 147.368423 : f32
    %cst_8 = arith.constant 4.000000e+02 : f32
    %26 = vector.broadcast %cst : f32 to vector<6x128xf32>
    %27 = vector.broadcast %cst_8 : f32 to vector<6x128xf32>
    %28 = arith.select %25, %26, %27 : vector<6x128xi1>, vector<6x128xf32>
    %cst_9 = arith.constant 147.368423 : f32
    %29 = vector.broadcast %cst_9 : f32 to vector<6x128xf32>
    %30 = arith.select %23, %29, %28 : vector<6x128xi1>, vector<6x128xf32>
    %31 = arith.mulf %30, %4 : vector<6x128xf32>
    %32 = vector.shape_cast %31 : vector<6x128xf32> to vector<1x6x128xf32>
    %cst_10 = arith.constant dense<0.000000e+00> : vector<1xf32>
    %33 = vector.multi_reduction <add>, %32, %cst_10 [1, 2] : vector<1x6x128xf32> to vector<1xf32>
    %34 = vector.shape_cast %33 : vector<1xf32> to vector<1x1x1xf32>
    %35 = vector.extract %34[0, 0, 0] : f32 from vector<1x1x1xf32>
    %c0_11 = arith.constant 0 : index
    %c0_12 = arith.constant 0 : index
    %36 = vector.load %arg2[%c0_11, %c0_12] : memref<1x1xf32, #tpu.memory_space<vmem>>, vector<1x1xf32>
    %37 = vector.broadcast %35 : f32 to vector<1x1xf32>
    %38 = arith.addf %36, %37 : vector<1x1xf32>
    %c0_13 = arith.constant 0 : index
    %c0_14 = arith.constant 0 : index
    %39 = vector.load %arg2[%c0_13, %c0_14] : memref<1x1xf32, #tpu.memory_space<vmem>>, vector<1x1xf32>
    tpu.vector_store %arg2[%c0_13, %c0_14], %38 {strides = array<i32>} : memref<1x1xf32, #tpu.memory_space<vmem>>, vector<1x1xf32>,
    return
  }
  func.func @transform_0(%arg0: i32) -> (i32, i32) {
    %c0_i32 = arith.constant 0 : i32
    %c0_i32_0 = arith.constant 0 : i32
    return %c0_i32, %arg0 : i32, i32
  }
  func.func @transform_1(%arg0: i32) -> (i32, i32) {
    %c0_i32 = arith.constant 0 : i32
    %c0_i32_0 = arith.constant 0 : i32
    %c0_i32_1 = arith.constant 0 : i32
    return %c0_i32, %c0_i32_0 : i32, i32
  }
}

</mosaic_0001>

<llo_original>
// kernel: loss_fn.1
$region0: #{loss_fn.1}
  #allocation0 [shape = 'u32[]', space=smem, size = 0x4, offset = 0x4, fixed_abs, tag = 'smem constant byte address 0x4 - core index']
  #allocation1 [shape = 'u32[144,128]{1,0:T(1,128)}', space=vmem, size = 0x12000, scoped, tag = 'internal scratch']
  %s0 = inlined_call_operand.vmem [shape: f32[6,128], index: 0, kind: input, shape index: {}]
  %s1 = inlined_call_operand.hbm [shape: f32[1,1], index: 1, kind: output, shape index: {}]
  %s2 = sld [smem:[#allocation0]]
  $region18: #{loss_fn.1} parent=0
    _
  %s4 = ssub.s32 1, %s2
  %s5 = scalar_select 0, %s4, %s2
  $region1: #{loss_fn.1} parent=0
    #allocation2 [shape = 'u8[512]{0}', space=vmem, size = 0x400, scoped, tag = 'output window, operand 0, single buffered']
    #allocation3 [shape = 's32[1]{0}', space=sflag, size = 0x4, scoped, tag = 'scoped memory for loss_fn.1']
    %6 = vsyncpa [#allocation3], 0
    // Predicated region
    $region2: #{loss_fn.1} parent=1 // pred_check
      _
    $region3: #{loss_fn.1} parent=1 // pred_check_branch
      %8 = sbr.rel (0) target = $region5
    $region4: #{loss_fn.1} parent=1 // pred_region
      _
    $region5: #{loss_fn.1} parent=1 // pred_fallthru
      _
    %p9 = scmp.eq.s32.totalorder 0, 0
    // Predicated region
    $region6: #{loss_fn.1} parent=1 // pred_check
      %p10 = pneg %p9
    $region7: #{loss_fn.1} parent=1 // pred_check_branch
      %12 = sbr.rel (%p10) target = $region9
    $region8: #{loss_fn.1} parent=1 // pred_region
      %vm13 = vcmask 0
      %14 = vst.msk [vmem:[#allocation2] sm:$0x1] %vm13, 0.0
    $region9: #{loss_fn.1} parent=1 // pred_fallthru
      _
    %v15 = vld [vmem:[%s0] sm:$0x3f]
    %v16 = vmul.f32 %v15, %v15
    %v17 = vlaneseq
    %v18 = vshrl.u32 %v17, 7
    %vm19 = vcmp.lt.s32.totalorder %v18, 0
    %v20 = vsub.s32 0, %v18
    %v21 = vsel %vm19, %v20, %v18
    %v22 = vmul.u32.u64.compose %v21, 2863311531
    %v23 = vextract.low.u32 %v22
    %v24 = vextract.high.u32 %v22
    %v25 = vshrl.u32 %v24, 1
    %v26 = vmul.u32 %v25, 3
    %v27 = vsub.s32 %v21, %v26
    %v28 = vsub.s32 0, %v27
    %v29 = vsel %vm19, %v28, %v27
    %vm30 = vcmp.ne.s32.totalorder %v29, 0
    %vm31 = vcmp.lt.s32.totalorder %v29, 0
    %vm32 = vmand %vm31, %vm30
    %v33 = vadd.s32 %v29, 3
    %v34 = vsel %vm32, %v33, %v29
    %vm35 = vcmp.eq.s32.totalorder %v34, 0
    %vm36 = vcmp.eq.s32.totalorder %v34, 1
    %v37 = vsel %vm36, 147.36842, 400.0
    %v38 = vsel %vm35, 147.36842, %v37
    %v39 = vmul.f32 %v38, %v16
    %vm40 = vcmask 1045504
    %v41 = vsel %vm40, %v39, 0.0
    %42 = vadd.xlane.f32.xlu0 %v41
    %v43 = vpop.xlane.xlu0 %42
    %v44 = vrot.slane %v43, 4
    %v45 = vadd.f32 %v43, %v44
    %v46 = vrot.slane %v45, 2
    %v47 = vadd.f32 %v45, %v46
    %v48 = vrot.slane %v47, 1
    %v49 = vadd.f32 %v47, %v48
    %s50 = vtos %v49
    %v51 = vld [vmem:[#allocation2] sm:$0x1]
    %v52 = vstv %s50
    %v53 = vadd.f32 %v51, %v52
    %vm54 = vcmask 0
    %55 = vst.msk [vmem:[#allocation2] sm:$0x1] %vm54, %v53
    // Predicated region
    $region10: #{loss_fn.1} parent=1 // pred_check
      _
    $region11: #{loss_fn.1} parent=1 // pred_check_branch
      %57 = sbr.rel (0) target = $region13
    $region12: #{loss_fn.1} parent=1 // pred_region
      %s59 = ssub.s32 16, 16
      %60 = vsyncadd [#allocation3], %s59
      %s62 = sshll.u32 [#allocation2], 4
      %s63 = int_to_ptr.vmem [resolvable:$true] %s62
      %65 = dma.vmem_to_hbm [thread:$0]  %s63, 16, %s1, [#allocation3]
    $region13: #{loss_fn.1} parent=1 // pred_fallthru
      _
    // Predicated region
    $region14: #{loss_fn.1} parent=1 // pred_check
      _
    $region15: #{loss_fn.1} parent=1 // pred_check_branch
      %67 = sbr.rel (0) target = $region17
    $region16: #{loss_fn.1} parent=1 // pred_region
      %68 = dma.done [#allocation3], 16
    $region17: #{loss_fn.1} parent=1 // pred_fallthru
      _
    %69 = vsyncpa [#allocation3], 1

</llo_original>
